<compile_context>
chip_gen: v7x
topology: tpu7x:2x2x1
jax: 0.10.0
libtpu: 0.0.40
codegen_flags: <defaults>
</compile_context>

<pallas_src>
import functools

import jax
import jax.numpy as jnp
from jax.experimental import pallas as pl
from jax.experimental.pallas import tpu as pltpu


# Budget for pipeline buffers + in-kernel temporaries.  48 MiB scoped limit
# stays under v7x's 64 MiB physical VMEM and well under v5e/v6e's 128 MiB.
_VMEM_BUDGET_BYTES = 40 * 1024 * 1024
_VMEM_LIMIT_BYTES = 48 * 1024 * 1024


def _sublane_multiple(dtype) -> int:
    itemsize = jnp.dtype(dtype).itemsize
    if itemsize >= 4:
        return 8
    if itemsize == 2:
        return 16
    return 32


def _round_up(n: int, m: int) -> int:
    return ((n + m - 1) // m) * m


def _rmsnorm_kernel(x_ref, z_ref, w_ref, o_ref, *, eps):
    # Compute in f32 for numerical parity with the PyTorch reference.
    x = x_ref[...].astype(jnp.float32)          # (TR, d)
    z = z_ref[...].astype(jnp.float32)          # (TR, d)
    w = w_ref[...].astype(jnp.float32)          # (1, d)

    # Gated input: x * silu(z).
    g = x * (z * jax.nn.sigmoid(z))

    # mean(g^2) over the feature dim (the block holds the full feature dim,
    # so this is exact).
    ms = jnp.mean(g * g, axis=-1, keepdims=True)            # (TR, 1)
    inv = jax.lax.rsqrt(ms + eps)                            # (TR, 1)

    o_ref[...] = (g * inv * w).astype(o_ref.dtype)


def rmsnorm(x, z, weight, eps: float = 1e-5, row_tile: int = 1024):
    """x, z: (..., d); weight: (d,). Returns same shape/dtype as x."""
    assert x.shape == z.shape
    d = x.shape[-1]
    assert weight.shape == (d,)

    orig_shape = x.shape
    rows = 1
    for s in orig_shape[:-1]:
        rows *= s

    x2 = x.reshape(rows, d)          # metadata-only reshape, no HBM pass
    z2 = z.reshape(rows, d)
    w2 = weight.reshape(1, d)

    in_itemsize = jnp.dtype(x.dtype).itemsize
    w_itemsize = jnp.dtype(weight.dtype).itemsize
    sub = _sublane_multiple(x.dtype)

    # --- Row tile from a VMEM byte budget ---------------------------------
    # Per row of tile: x/z/out double-buffered pipeline blocks plus ~3 live
    # f32 temporaries (casts / g) inside the kernel.
    bytes_per_row = 3 * 2 * d * in_itemsize + 3 * d * 4
    tr_budget = max(sub, (_VMEM_BUDGET_BYTES // bytes_per_row) // sub * sub)

    tr = min(_round_up(row_tile, sub), tr_budget, _round_up(rows, sub))
    # Keep >= 2 row blocks whenever possible so the "parallel" axis can feed
    # both v7x TensorCores (neutral on v5e/v6e).
    if rows > sub:
        tr = min(tr, _round_up(pl.cdiv(rows, 2), sub))
    tr = max(tr, sub)

    grid = (pl.cdiv(rows, tr),)      # edge block is clipped by Pallas

    cost = pl.CostEstimate(
        flops=6 * rows * d,
        transcendentals=rows * d,
        bytes_accessed=(2 * rows * d * in_itemsize     # x, z reads
                        + d * w_itemsize               # weight read
                        + rows * d * in_itemsize),     # output write
    )

    kernel = functools.partial(_rmsnorm_kernel, eps=eps)

    out = pl.pallas_call(
        kernel,
        out_shape=jax.ShapeDtypeStruct((rows, d), x.dtype),
        grid=grid,
        in_specs=[
            pl.BlockSpec((tr, d), lambda i: (i, 0)),
            pl.BlockSpec((tr, d), lambda i: (i, 0)),
            pl.BlockSpec((1, d), lambda i: (0, 0)),    # resident weight
        ],
        out_specs=pl.BlockSpec((tr, d), lambda i: (i, 0)),
        compiler_params=pltpu.CompilerParams(
            dimension_semantics=("parallel",),
            vmem_limit_bytes=_VMEM_LIMIT_BYTES,
        ),
        cost_estimate=cost,
    )(x2, z2, w2)

    return out.reshape(orig_shape)


def _reference(x, z, weight, eps=1e-5):
    xf = x.astype(jnp.float32)
    zf = z.astype(jnp.float32)
    g = xf * (zf * jax.nn.sigmoid(zf))
    ms = jnp.mean(g * g, axis=-1, keepdims=True)
    return (g * jax.lax.rsqrt(ms + eps) * weight.astype(jnp.float32)).astype(x.dtype)


if __name__ == "__main__":
    key = jax.random.PRNGKey(0)
    k1, k2, k3, k4, k5, k6 = jax.random.split(key, 6)

    # Test 1: lane-aligned feature dim (d = 128), even row blocks.
    batch, seq, d = 2, 8, 128
    x = jax.random.normal(k1, (batch, seq, d), dtype=jnp.float32)
    z = jax.random.normal(k2, (batch, seq, d), dtype=jnp.float32)
    weight = jnp.ones((d,), dtype=jnp.float32)   # nn.Parameter(torch.ones(d))

    out = rmsnorm(x, z, weight, eps=1e-5)
    jax.block_until_ready(out)
    ref = _reference(x, z, weight, eps=1e-5)
    assert out.shape == x.shape
    assert jnp.allclose(out, ref, atol=1e-5, rtol=1e-5), "mismatch (d=128)"

    # Test 2: feature dim not a multiple of 128 (full-d block path, no padding).
    d2 = 32
    x2 = jax.random.normal(k3, (batch, seq, d2), dtype=jnp.float32)
    z2 = jax.random.normal(k4, (batch, seq, d2), dtype=jnp.float32)
    w2 = jnp.ones((d2,), dtype=jnp.float32)

    out2 = rmsnorm(x2, z2, w2, eps=1e-5)
    jax.block_until_ready(out2)
    ref2 = _reference(x2, z2, w2, eps=1e-5)
    assert out2.shape == x2.shape
    assert jnp.allclose(out2, ref2, atol=1e-5, rtol=1e-5), "mismatch (d=32)"

    # Test 3: rows not a multiple of the row tile (exercises clipped edge
    # block) and d not a multiple of 128.
    b3, s3, d3 = 3, 7, 96
    x3 = jax.random.normal(k5, (b3, s3, d3), dtype=jnp.float32)
    z3 = jax.random.normal(k6, (b3, s3, d3), dtype=jnp.float32)
    w3 = jnp.ones((d3,), dtype=jnp.float32)

    out3 = rmsnorm(x3, z3, w3, eps=1e-5)
    jax.block_until_ready(out3)
    ref3 = _reference(x3, z3, w3, eps=1e-5)
    assert out3.shape == x3.shape
    assert jnp.allclose(out3, ref3, atol=1e-5, rtol=1e-5), "mismatch (ragged rows)"

    print("KERNEL_OK")
</pallas_src>

<mosaic_0001>
module attributes {stable_mosaic.version = 11 : i64} {
  func.func @_rmsnorm_kernel(%arg0: i32, %arg1: memref<8x128xf32, #tpu.memory_space<vmem>>, %arg2: memref<8x128xf32, #tpu.memory_space<vmem>>, %arg3: memref<1x128xf32, #tpu.memory_space<vmem>>, %arg4: memref<8x128xf32, #tpu.memory_space<vmem>>) attributes {dimension_semantics = [#tpu.dimension_semantics<parallel>], iteration_bounds = array<i64: 2>, scalar_prefetch = 0 : i64, scratch_operands = 0 : i64, tpu.core_type = #tpu.core_type<tc>, window_params = [{transform_indices = @transform_0, window_bounds = array<i64: 8, 128>}, {transform_indices = @transform_1, window_bounds = array<i64: 8, 128>}, {pipeline_mode = #tpu.pipeline_mode<synchronous>, transform_indices = @transform_2, window_bounds = array<i64: 1, 128>}, {transform_indices = @transform_3, window_bounds = array<i64: 8, 128>}]} {
    %c0 = arith.constant 0 : index
    %c0_0 = arith.constant 0 : index
    %0 = vector.load %arg1[%c0, %c0_0] : memref<8x128xf32, #tpu.memory_space<vmem>>, vector<8x128xf32>
    %c0_1 = arith.constant 0 : index
    %c0_2 = arith.constant 0 : index
    %1 = vector.load %arg2[%c0_1, %c0_2] : memref<8x128xf32, #tpu.memory_space<vmem>>, vector<8x128xf32>
    %c0_3 = arith.constant 0 : index
    %c0_4 = arith.constant 0 : index
    %2 = vector.load %arg3[%c0_3, %c0_4] : memref<1x128xf32, #tpu.memory_space<vmem>>, vector<1x128xf32>
    %3 = arith.negf %1 : vector<8x128xf32>
    %4 = math.exp %3 : vector<8x128xf32>
    %cst = arith.constant 1.000000e+00 : f32
    %5 = vector.broadcast %cst : f32 to vector<8x128xf32>
    %6 = arith.addf %5, %4 : vector<8x128xf32>
    %7 = arith.divf %5, %6 : vector<8x128xf32>
    %8 = arith.mulf %1, %7 : vector<8x128xf32>
    %9 = arith.mulf %0, %8 : vector<8x128xf32>
    %10 = arith.mulf %9, %9 : vector<8x128xf32>
    %cst_5 = arith.constant dense<0.000000e+00> : vector<8xf32>
    %11 = vector.multi_reduction <add>, %10, %cst_5 [1] : vector<8x128xf32> to vector<8xf32>
    %12 = vector.shape_cast %11 : vector<8xf32> to vector<8x1xf32>
    %cst_6 = arith.constant 1.280000e+02 : f32
    %13 = vector.broadcast %cst_6 : f32 to vector<8x1xf32>
    %14 = arith.divf %12, %13 : vector<8x1xf32>
    %cst_7 = arith.constant 9.99999974E-6 : f32
    %15 = vector.broadcast %cst_7 : f32 to vector<8x1xf32>
    %16 = arith.addf %14, %15 : vector<8x1xf32>
    %17 = math.rsqrt %16 : vector<8x1xf32>
    %18 = vector.broadcast %17 : vector<8x1xf32> to vector<8x128xf32>
    %19 = arith.mulf %9, %18 : vector<8x128xf32>
    %20 = vector.broadcast %2 : vector<1x128xf32> to vector<8x128xf32>
    %21 = arith.mulf %19, %20 : vector<8x128xf32>
    %c0_8 = arith.constant 0 : index
    %c0_9 = arith.constant 0 : index
    %22 = vector.load %arg4[%c0_8, %c0_9] : memref<8x128xf32, #tpu.memory_space<vmem>>, vector<8x128xf32>
    tpu.vector_store %arg4[%c0_8, %c0_9], %21 {strides = array<i32>} : memref<8x128xf32, #tpu.memory_space<vmem>>, vector<8x128xf32>,
    return
  }
  func.func @transform_0(%arg0: i32) -> (i32, i32) {
    %c0_i32 = arith.constant 0 : i32
    %c0_i32_0 = arith.constant 0 : i32
    return %arg0, %c0_i32 : i32, i32
  }
  func.func @transform_1(%arg0: i32) -> (i32, i32) {
    %c0_i32 = arith.constant 0 : i32
    %c0_i32_0 = arith.constant 0 : i32
    return %arg0, %c0_i32 : i32, i32
  }
  func.func @transform_2(%arg0: i32) -> (i32, i32) {
    %c0_i32 = arith.constant 0 : i32
    %c0_i32_0 = arith.constant 0 : i32
    %c0_i32_1 = arith.constant 0 : i32
    return %c0_i32, %c0_i32_0 : i32, i32
  }
  func.func @transform_3(%arg0: i32) -> (i32, i32) {
    %c0_i32 = arith.constant 0 : i32
    %c0_i32_0 = arith.constant 0 : i32
    return %arg0, %c0_i32 : i32, i32
  }
}

</mosaic_0001>

<llo_original>
// kernel: tpu_custom_call.1
$region0: #{tpu_custom_call.1}
  #allocation0 [shape = 'u32[]', space=smem, size = 0x4, offset = 0x4, fixed_abs, tag = 'smem constant byte address 0x4 - core index']
  #allocation1 [shape = 'u32[144,128]{1,0:T(1,128)}', space=vmem, size = 0x12000, scoped, tag = 'internal scratch']
  %s0 = inlined_call_operand.hbm [shape: f32[16,128], index: 0, kind: input, shape index: {}]
  %s1 = inlined_call_operand.hbm [shape: f32[16,128], index: 1, kind: input, shape index: {}]
  %s2 = inlined_call_operand.vmem [shape: f32[1,128], index: 2, kind: input, shape index: {}]
  %s3 = inlined_call_operand.hbm [shape: f32[16,128], index: 3, kind: output, shape index: {}]
  %s4 = sld [smem:[#allocation0]]
  $region53: #{tpu_custom_call.1} parent=0
    _
  %s6 = ssub.s32 1, %s4
  %s7 = scalar_select 0, %s6, %s4
  $region1: #{tpu_custom_call.1} parent=0
    #allocation2 [shape = 'u8[8192]{0}', space=vmem, size = 0x2000, scoped, tag = 'input window, operand 0']
    #allocation3 [shape = 's32[2]{0}', space=sflag, size = 0x8, scoped, tag = 'scoped memory for tpu_custom_call.1']
    #allocation4 [shape = 's32[2]{0}', space=sflag, size = 0x8, scoped, tag = 'scoped memory for tpu_custom_call.1']
    #allocation5 [shape = 'u8[8192]{0}', space=vmem, size = 0x2000, scoped, tag = 'input window, operand 1']
    #allocation6 [shape = 's32[2]{0}', space=sflag, size = 0x8, scoped, tag = 'scoped memory for tpu_custom_call.1']
    #allocation7 [shape = 'u8[8192]{0}', space=vmem, size = 0x2000, scoped, tag = 'output window, operand 0']
    %8 = vsyncpa [#allocation3], 0
    %s9 = scalar_lea.sflag [#allocation3], 1
    %10 = vsyncpa %s9, 0
    %11 = vsyncpa [#allocation6], 0
    %s12 = scalar_lea.sflag [#allocation6], 1
    %13 = vsyncpa %s12, 0
    %14 = vsyncpa [#allocation4], 0
    %s15 = scalar_lea.sflag [#allocation4], 1
    %16 = vsyncpa %s15, 0
    loop: start=0, step=1, limit=4
    $region2: #{tpu_custom_call.1} parent=1 // loop_pre_header
      _
    $region3: #{tpu_custom_call.1} parent=1 // loop_header
      %s18 = sphi 0, %s22
      %p19 = scmp.ge.s32.totalorder %s18, 4
      %s28 = sphi 0, %s30
      %s31 = sphi 0, %s28
      %s32 = sphi 0, %s31
      %s48 = sphi 0, %s32
      %s54 = sphi 0, %s56
      %s57 = sphi 0, %s54
      %s58 = sphi 0, %s57
      %s74 = sphi 0, %s58
      %s78 = sphi 0, %s78
      %s80 = sphi 0, %s78
      %s81 = sphi 0, %s80
      %s95 = sphi 0, %s81
      %s101 = sphi 0, %s103
      %s104 = sphi 0, %s101
      %s105 = sphi 0, %s104
      %s121 = sphi 0, %s105
    $region4: #{tpu_custom_call.1} parent=1 // loop_header_branch
      %21 = sbr.rel (%p19) target = $region8
    $region5: #{tpu_custom_call.1} parent=1 // loop_body
      %s23 = ssub.s32 %s18, 1
      %s24 = ssub.s32 %s18, 2
      %s25 = sadd.s32 %s18, 1
      %s26 = ssub.s32 %s18, %s25
      %p27 = scmp.eq.s32.totalorder %s26, 0
      %s29 = sadd.s32 %s28, 1
      %s30 = scalar_select %p27, %s28, %s29
      %p33 = pneg %p27
      %p34 = scmp.eq.s32.totalorder %s18, 1
      %p35 = por %p33, %p34
      %p36 = scmp.ne.s32.totalorder %s28, %s31
      %p37 = scmp.eq.s32.totalorder %s18, 0
      %p38 = por %p36, %p37
      %p39 = scmp.ne.s32.totalorder %s28, %s31
      %p40 = scmp.eq.s32.totalorder %s23, 1
      %p41 = por %p39, %p40
      %p42 = scmp.ne.s32.totalorder %s31, %s32
      %p43 = scmp.eq.s32.totalorder %s23, 0
      %p44 = por %p42, %p43
      %p45 = scmp.ne.s32.totalorder %s31, %s32
      %p46 = scmp.eq.s32.totalorder %s24, 1
      %p47 = por %p45, %p46
      %p49 = scmp.ne.s32.totalorder %s32, %s48
      %p50 = scmp.eq.s32.totalorder %s24, 0
      %p51 = por %p49, %p50
      %s52 = ssub.s32 %s18, %s25
      %p53 = scmp.eq.s32.totalorder %s52, 0
      %s55 = sadd.s32 %s54, 1
      %s56 = scalar_select %p53, %s54, %s55
      %p59 = pneg %p53
      %p60 = scmp.eq.s32.totalorder %s18, 1
      %p61 = por %p59, %p60
      %p62 = scmp.ne.s32.totalorder %s54, %s57
      %p63 = scmp.eq.s32.totalorder %s18, 0
      %p64 = por %p62, %p63
      %p65 = scmp.ne.s32.totalorder %s54, %s57
      %p66 = scmp.eq.s32.totalorder %s23, 1
      %p67 = por %p65, %p66
      %p68 = scmp.ne.s32.totalorder %s57, %s58
      %p69 = scmp.eq.s32.totalorder %s23, 0
      %p70 = por %p68, %p69
      %p71 = scmp.ne.s32.totalorder %s57, %s58
      %p72 = scmp.eq.s32.totalorder %s24, 1
      %p73 = por %p71, %p72
      %p75 = scmp.ne.s32.totalorder %s58, %s74
      %p76 = scmp.eq.s32.totalorder %s24, 0
      %p77 = por %p75, %p76
      %s79 = sadd.s32 %s78, 1
      %p82 = scmp.eq.s32.totalorder %s18, 1
      %p83 = scmp.ne.s32.totalorder %s78, %s80
      %p84 = scmp.eq.s32.totalorder %s18, 0
      %p85 = por %p83, %p84
      %p86 = scmp.ne.s32.totalorder %s78, %s80
      %p87 = scmp.eq.s32.totalorder %s23, 1
      %p88 = por %p86, %p87
      %p89 = scmp.ne.s32.totalorder %s80, %s81
      %p90 = scmp.eq.s32.totalorder %s23, 0
      %p91 = por %p89, %p90
      %p92 = scmp.ne.s32.totalorder %s80, %s81
      %p93 = scmp.eq.s32.totalorder %s24, 1
      %p94 = por %p92, %p93
      %p96 = scmp.ne.s32.totalorder %s81, %s95
      %p97 = scmp.eq.s32.totalorder %s24, 0
      %p98 = por %p96, %p97
      %s99 = ssub.s32 %s18, %s25
      %p100 = scmp.eq.s32.totalorder %s99, 0
      %s102 = sadd.s32 %s101, 1
      %s103 = scalar_select %p100, %s101, %s102
      %p106 = pneg %p100
      %p107 = scmp.eq.s32.totalorder %s18, 1
      %p108 = por %p106, %p107
      %p109 = scmp.ne.s32.totalorder %s101, %s104
      %p110 = scmp.eq.s32.totalorder %s18, 0
      %p111 = por %p109, %p110
      %p112 = scmp.ne.s32.totalorder %s101, %s104
      %p113 = scmp.eq.s32.totalorder %s23, 1
      %p114 = por %p112, %p113
      %p115 = scmp.ne.s32.totalorder %s104, %s105
      %p116 = scmp.eq.s32.totalorder %s23, 0
      %p117 = por %p115, %p116
      %p118 = scmp.ne.s32.totalorder %s104, %s105
      %p119 = scmp.eq.s32.totalorder %s24, 1
      %p120 = por %p118, %p119
      %p122 = scmp.ne.s32.totalorder %s105, %s121
      %p123 = scmp.eq.s32.totalorder %s24, 0
      %p124 = por %p122, %p123
      %p125 = scmp.le.s32.totalorder 1, %s18
      %p126 = scmp.lt.s32.totalorder %s18, 3
      %p127 = pnand %p125, %p126
      %p128 = pneg %p127
      // Predicated region
      $region9: #{tpu_custom_call.1} parent=5 // pred_check
        _
      $region10: #{tpu_custom_call.1} parent=5 // pred_check_branch
        %130 = sbr.rel (%p127) target = $region12
      $region11: #{tpu_custom_call.1} parent=5 // pred_region
        %s131 = ssub.s32 %s18, 1
        // Predicated region
        $region13: #{tpu_custom_call.1} parent=11 // pred_check
          %p132 = pneg %p91
        $region14: #{tpu_custom_call.1} parent=11 // pred_check_branch
          %134 = sbr.rel (%p132) target = $region16
        $region15: #{tpu_custom_call.1} parent=11 // pred_region
          _
        $region16: #{tpu_custom_call.1} parent=11 // pred_fallthru
          _
      $region12: #{tpu_custom_call.1} parent=5 // pred_fallthru
        _
      %p135 = scmp.lt.s32.totalorder %s18, 2
      // Predicated region
      $region17: #{tpu_custom_call.1} parent=5 // pred_check
        %p136 = pneg %p135
      $region18: #{tpu_custom_call.1} parent=5 // pred_check_branch
        %138 = sbr.rel (%p136) target = $region20
      $region19: #{tpu_custom_call.1} parent=5 // pred_region
        // Predicated region
        $region21: #{tpu_custom_call.1} parent=19 // pred_check
          %p139 = pneg %p38
        $region22: #{tpu_custom_call.1} parent=19 // pred_check_branch
          %141 = sbr.rel (%p139) target = $region24
        $region23: #{tpu_custom_call.1} parent=19 // pred_region
          %s142 = sand.u32 %s28, 1
          %s143 = scalar_lea.sflag [#allocation3], %s142
          %s144 = sand.u32 %s28, 1
          %s145 = smul.addr %s144, 8
          %s146 = scalar_lea.vmem [#allocation2], %s145
          %s148 = ssub.s32 128, 128
          %149 = vsyncadd %s143, %s148
          %s150 = smul.addr %s18, 128
          %s151 = scalar_lea.hbm %s0, %s150
          %s153 = sshll.u32 %s146, 4
          %s154 = int_to_ptr.vmem [resolvable:$true] %s153
          %156 = dma.hbm_to_vmem [thread:$0]  %s151, 128, %s154, %s143
        $region24: #{tpu_custom_call.1} parent=19 // pred_fallthru
          _
        // Predicated region
        $region25: #{tpu_custom_call.1} parent=19 // pred_check
          %p157 = pneg %p64
        $region26: #{tpu_custom_call.1} parent=19 // pred_check_branch
          %159 = sbr.rel (%p157) target = $region28
        $region27: #{tpu_custom_call.1} parent=19 // pred_region
          %s160 = sand.u32 %s54, 1
          %s161 = scalar_lea.sflag [#allocation6], %s160
          %s162 = sand.u32 %s54, 1
          %s163 = smul.addr %s162, 8
          %s164 = scalar_lea.vmem [#allocation5], %s163
          %s166 = ssub.s32 128, 128
          %167 = vsyncadd %s161, %s166
          %s168 = smul.addr %s18, 128
          %s169 = scalar_lea.hbm %s1, %s168
          %s171 = sshll.u32 %s164, 4
          %s172 = int_to_ptr.vmem [resolvable:$true] %s171
          %174 = dma.hbm_to_vmem [thread:$0]  %s169, 128, %s172, %s161
        $region28: #{tpu_custom_call.1} parent=19 // pred_fallthru
          _
      $region20: #{tpu_custom_call.1} parent=5 // pred_fallthru
        _
      %p175 = scmp.le.s32.totalorder 1, %s18
      %p176 = scmp.lt.s32.totalorder %s18, 3
      %p177 = pnand %p175, %p176
      %p178 = pneg %p177
      // Predicated region
      $region29: #{tpu_custom_call.1} parent=5 // pred_check
        _
      $region30: #{tpu_custom_call.1} parent=5 // pred_check_branch
        %180 = sbr.rel (%p177) target = $region32
      $region31: #{tpu_custom_call.1} parent=5 // pred_region
        %s181 = ssub.s32 %s18, 1
        %s182 = sand.u32 %s31, 1
        %s183 = scalar_lea.sflag [#allocation3], %s182
        %s184 = sand.u32 %s31, 1
        %s185 = smul.addr %s184, 8
        %s186 = scalar_lea.vmem [#allocation2], %s185
        // Predicated region
        $region33: #{tpu_custom_call.1} parent=31 // pred_check
          %p187 = pneg %p44
        $region34: #{tpu_custom_call.1} parent=31 // pred_check_branch
          %189 = sbr.rel (%p187) target = $region36
        $region35: #{tpu_custom_call.1} parent=31 // pred_region
          %190 = dma.done %s183, 128
        $region36: #{tpu_custom_call.1} parent=31 // pred_fallthru
          _
        %s191 = sand.u32 %s57, 1
        %s192 = scalar_lea.sflag [#allocation6], %s191
        %s193 = sand.u32 %s57, 1
        %s194 = smul.addr %s193, 8
        %s195 = scalar_lea.vmem [#allocation5], %s194
        // Predicated region
        $region37: #{tpu_custom_call.1} parent=31 // pred_check
          %p196 = pneg %p70
        $region38: #{tpu_custom_call.1} parent=31 // pred_check_branch
          %198 = sbr.rel (%p196) target = $region40
        $region39: #{tpu_custom_call.1} parent=31 // pred_region
          %199 = dma.done %s192, 128
        $region40: #{tpu_custom_call.1} parent=31 // pred_fallthru
          _
        %s200 = sand.u32 %s31, 1
        %s201 = scalar_lea.sflag [#allocation3], %s200
        %s202 = sand.u32 %s31, 1
        %s203 = smul.addr %s202, 8
        %s204 = scalar_lea.vmem [#allocation2], %s203
        %p205 = pneg %p44
        %p206 = pneg %p41
        %s207 = sand.u32 %s57, 1
        %s208 = scalar_lea.sflag [#allocation6], %s207
        %s209 = sand.u32 %s57, 1
        %s210 = smul.addr %s209, 8
        %s211 = scalar_lea.vmem [#allocation5], %s210
        %p212 = pneg %p70
        %p213 = pneg %p67
        %p214 = pneg %p91
        %p215 = pneg %p88
        %p216 = pneg %p117
        %p217 = pneg %p114
        %s218 = sand.u32 %s104, 1
        %s219 = scalar_lea.sflag [#allocation4], %s218
        %s220 = sand.u32 %s104, 1
        %s221 = smul.addr %s220, 8
        %s222 = scalar_lea.vmem [#allocation7], %s221
        %v223 = vld [vmem:[%s186] sm:$0xff]
        %v224 = vld [vmem:[%s195] sm:$0xff]
        %v225 = vld [vmem:[%s2] sm:$0x1]
        %v226 = vxor.u32 %v224, 2147483648
        %v227 = vmul.f32 %v226, 1.442695
        %v228 = vpow.pop %v227
        %v229 = vadd.f32 %v228, 1.0
        %v230 = vrcp.pop %v229
        %v231 = vmul.f32 1.0, %v230
        %v232 = vmul.f32 %v224, %v231
        %v233 = vmul.f32 %v223, %v232
        %v234 = vmul.f32 %v233, %v233
        %235 = vadd.xlane.f32.xlu0 %v234
        %v236 = vpop.xlane.xlu0 %235
        %v237 = vrcp.pop 128.0
        %v238 = vmul.f32 %v236, %v237
        %v239 = vadd.f32 %v238, 1e-05
        %v240 = vrsqrt.pop %v239
        %v241 = vmul.f32 %v233, %v240
        %v243 = vlaneseq
        %v244 = vshrl.u32 %v243, 7
        %v245 = vsub.s32 0, %v244
        %v246 = vrot.slane %v225, %v245
        %v248 = vmul.f32 %v241, %v246
        %249 = vst [vmem:[%s222] sm:$0xff] %v248
        %s250 = sand.u32 %s104, 1
        %s251 = scalar_lea.sflag [#allocation4], %s250
        %s252 = sand.u32 %s104, 1
        %s253 = smul.addr %s252, 8
        %s254 = scalar_lea.vmem [#allocation7], %s253
        // Predicated region
        $region41: #{tpu_custom_call.1} parent=31 // pred_check
          %p255 = pneg %p114
        $region42: #{tpu_custom_call.1} parent=31 // pred_check_branch
          %257 = sbr.rel (%p255) target = $region44
        $region43: #{tpu_custom_call.1} parent=31 // pred_region
          %s259 = ssub.s32 128, 128
          %260 = vsyncadd %s251, %s259
          %s261 = smul.addr %s23, 128
          %s262 = scalar_lea.hbm %s3, %s261
          %s264 = sshll.u32 %s254, 4
          %s265 = int_to_ptr.vmem [resolvable:$true] %s264
          %267 = dma.vmem_to_hbm [thread:$0]  %s265, 128, %s262, %s251
        $region44: #{tpu_custom_call.1} parent=31 // pred_fallthru
          _
      $region32: #{tpu_custom_call.1} parent=5 // pred_fallthru
        _
      %p268 = scmp.le.s32.totalorder 2, %s18
      // Predicated region
      $region45: #{tpu_custom_call.1} parent=5 // pred_check
        %p269 = pneg %p268
      $region46: #{tpu_custom_call.1} parent=5 // pred_check_branch
        %271 = sbr.rel (%p269) target = $region48
      $region47: #{tpu_custom_call.1} parent=5 // pred_region
        %s272 = ssub.s32 %s18, 2
        // Predicated region
        $region49: #{tpu_custom_call.1} parent=47 // pred_check
          %p273 = pneg %p120
        $region50: #{tpu_custom_call.1} parent=47 // pred_check_branch
          %275 = sbr.rel (%p273) target = $region52
        $region51: #{tpu_custom_call.1} parent=47 // pred_region
          %s276 = sand.u32 %s105, 1
          %s277 = scalar_lea.sflag [#allocation4], %s276
          %s278 = sand.u32 %s105, 1
          %s279 = smul.addr %s278, 8
          %s280 = scalar_lea.vmem [#allocation7], %s279
          %281 = dma.done %s277, 128
        $region52: #{tpu_custom_call.1} parent=47 // pred_fallthru
          _
      $region48: #{tpu_custom_call.1} parent=5 // pred_fallthru
        _
    $region6: #{tpu_custom_call.1} parent=1 // loop_footer
      %s22 = sadd.s32 1, %s18
    $region7: #{tpu_custom_call.1} parent=1 // loop_footer_branch
      %17 = sbr.rel target = $region3
    $region8: #{tpu_custom_call.1} parent=1 // loop_exit
      _
    %282 = vsyncpa [#allocation3], 1
    %s283 = scalar_lea.sflag [#allocation3], 1
    %284 = vsyncpa %s283, 1
    %285 = vsyncpa [#allocation6], 1
    %s286 = scalar_lea.sflag [#allocation6], 1
    %287 = vsyncpa %s286, 1
    %288 = vsyncpa [#allocation4], 1
    %s289 = scalar_lea.sflag [#allocation4], 1
    %290 = vsyncpa %s289, 1

</llo_original>
